<compile_context>
chip_gen: v7x
topology: tpu7x:2x2x1
jax: 0.10.0
libtpu: 0.0.40
codegen_flags: <defaults>
</compile_context>

<pallas_src>
import jax
import jax.numpy as jnp
from jax.experimental import pallas as pl
from jax.experimental.pallas import tpu as pltpu

NUM_ACTIONS = 4   # TODO(synk): len(ACTIONS) not given in the spec; assumed 4.
IN_DIM = 8
HIDDEN = 128
W3_PAD = 128      # fc3 weights kept 128-wide in VMEM for the full-lane MXU path


def dqn_kernel(x_ref, w1_ref, b1_ref, w2_ref, b2_ref, w3_ref, b3_ref, out_ref):
    # bf16 matmul operands (MXU fast path), f32 accumulation, f32 bias/ReLU
    # (safe on v5e's f32-only VPU).  astype is a no-op if x is already bf16.
    x = x_ref[...].astype(jnp.bfloat16)                                 # (TB, 8)
    h1 = jnp.dot(x, w1_ref[...], preferred_element_type=jnp.float32)   # (TB, 128)
    h1 = jnp.maximum(h1 + b1_ref[...], 0.0)
    h2 = jnp.dot(h1.astype(jnp.bfloat16), w2_ref[...],
                 preferred_element_type=jnp.float32)                    # (TB, 128)
    h2 = jnp.maximum(h2 + b2_ref[...], 0.0)
    o = jnp.dot(h2.astype(jnp.bfloat16), w3_ref[...],
                preferred_element_type=jnp.float32)                     # (TB, 128)
    o = o + b3_ref[...]
    # De-padded store: only NUM_ACTIONS columns go back to HBM.
    out_ref[...] = o[:, :NUM_ACTIONS]


def _round_up(n, m):
    return ((n + m - 1) // m) * m


def _choose_tile(B, block_b):
    tb = min(block_b, _round_up(B, 8))
    # v7x: only the "parallel" grid axis is sharded across the 2 TensorCores,
    # so for non-trivial batches keep at least 2 grid steps.
    if B > 256 and pl.cdiv(B, tb) < 2:
        tb = max(8, _round_up(pl.cdiv(B, 2), 8))
    return tb


def dqn_forward(x, params, block_b=2048):
    """x: (B, 8) float32 or bfloat16. params: dict from init_params.
    Returns (B, NUM_ACTIONS) float32."""
    w1, b1, w2, b2, w3, b3 = (params["w1"], params["b1"], params["w2"],
                              params["b2"], params["w3"], params["b3"])
    B = x.shape[0]
    tb = _choose_tile(B, block_b)
    grid = (pl.cdiv(B, tb),)

    def resident(shape):                    # weights/biases: same block every step
        return pl.BlockSpec(shape, lambda i: (0, 0))

    flops = 2 * B * (IN_DIM * HIDDEN + HIDDEN * HIDDEN + HIDDEN * NUM_ACTIONS)
    bytes_accessed = (int(x.size) * x.dtype.itemsize
                      + sum(int(p.size) * p.dtype.itemsize
                            for p in (w1, b1, w2, b2, w3, b3))
                      + B * NUM_ACTIONS * 4)

    return pl.pallas_call(
        dqn_kernel,
        out_shape=jax.ShapeDtypeStruct((B, NUM_ACTIONS), jnp.float32),
        grid=grid,
        in_specs=[
            pl.BlockSpec((tb, IN_DIM), lambda i: (i, 0)),   # x tile (pipelined)
            resident((IN_DIM, HIDDEN)),                      # w1
            resident((1, HIDDEN)),                           # b1
            resident((HIDDEN, HIDDEN)),                      # w2
            resident((1, HIDDEN)),                           # b2
            resident((HIDDEN, W3_PAD)),                      # w3 (128-wide in VMEM)
            resident((1, W3_PAD)),                           # b3 (128-wide in VMEM)
        ],
        # Last dim == full array dim (NUM_ACTIONS), so the (8,128) rule is met
        # and the HBM writeback is the narrow, un-padded output.
        out_specs=pl.BlockSpec((tb, NUM_ACTIONS), lambda i: (i, 0)),
        compiler_params=pltpu.CompilerParams(
            dimension_semantics=("parallel",),
            vmem_limit_bytes=32 * 1024 * 1024),
        cost_estimate=pl.CostEstimate(
            flops=flops, transcendentals=0, bytes_accessed=bytes_accessed),
    )(x, w1, b1, w2, b2, w3, b3)


def init_params(key):
    """Deterministic synthetic parameters with PyTorch Linear shapes.

    fc1: weight (128, 8),  bias (128,)
    fc2: weight (128, 128), bias (128,)
    fc3: weight (A, 128),  bias (A,)
    Stored pre-transposed to (in, out); weights bf16; fc3 weight/bias kept
    zero-padded to 128 columns for the full-lane MXU matmul (the kernel slices
    back to NUM_ACTIONS before storing); biases f32, shape (1, out).
    """
    k1, k2, k3, k4, k5, k6 = jax.random.split(key, 6)
    w1 = jax.random.normal(k1, (HIDDEN, IN_DIM), jnp.float32) * 0.1
    b1 = jax.random.normal(k2, (HIDDEN,), jnp.float32) * 0.1
    w2 = jax.random.normal(k3, (HIDDEN, HIDDEN), jnp.float32) * 0.1
    b2 = jax.random.normal(k4, (HIDDEN,), jnp.float32) * 0.1
    w3 = jax.random.normal(k5, (NUM_ACTIONS, HIDDEN), jnp.float32) * 0.1
    b3 = jax.random.normal(k6, (NUM_ACTIONS,), jnp.float32) * 0.1

    w3_pad = jnp.zeros((HIDDEN, W3_PAD), jnp.float32).at[:, :NUM_ACTIONS].set(w3.T)
    b3_pad = jnp.zeros((1, W3_PAD), jnp.float32).at[0, :NUM_ACTIONS].set(b3)

    return {
        "w1": w1.T.astype(jnp.bfloat16), "b1": b1.reshape(1, HIDDEN),
        "w2": w2.T.astype(jnp.bfloat16), "b2": b2.reshape(1, HIDDEN),
        "w3": w3_pad.astype(jnp.bfloat16), "b3": b3_pad,
    }


def dqn_reference(x, params):
    """Plain-JAX reference using the same bf16-operand / f32-accum math."""
    h1 = jnp.maximum(
        jnp.dot(x.astype(jnp.bfloat16), params["w1"],
                preferred_element_type=jnp.float32) + params["b1"], 0.0)
    h2 = jnp.maximum(
        jnp.dot(h1.astype(jnp.bfloat16), params["w2"],
                preferred_element_type=jnp.float32) + params["b2"], 0.0)
    o = jnp.dot(h2.astype(jnp.bfloat16), params["w3"],
                preferred_element_type=jnp.float32) + params["b3"]
    return o[:, :NUM_ACTIONS]


if __name__ == "__main__":
    key = jax.random.PRNGKey(0)
    kx, kp = jax.random.split(key)
    params = init_params(kp)

    # Small aligned batch.
    batch = 8
    x = jax.random.normal(kx, (batch, IN_DIM), jnp.float32)
    out = jax.block_until_ready(dqn_forward(x, params))
    ref = dqn_reference(x, params)
    assert out.shape == (batch, NUM_ACTIONS)
    assert jnp.allclose(out, ref, atol=1e-2, rtol=1e-2), "mismatch vs reference"

    # Ragged batch (B not a multiple of the 8-row sublane tile): exercises the
    # masked out-of-bounds writeback on the final block.
    x_rag = jax.random.normal(kx, (5, IN_DIM), jnp.float32)
    out_rag = jax.block_until_ready(dqn_forward(x_rag, params))
    ref_rag = dqn_reference(x_rag, params)
    assert out_rag.shape == (5, NUM_ACTIONS)
    assert jnp.allclose(out_rag, ref_rag, atol=1e-2, rtol=1e-2), "ragged mismatch"

    print("KERNEL_OK")
</pallas_src>

<mosaic_0001>
module attributes {stable_mosaic.version = 11 : i64} {
  func.func @dqn_kernel(%arg0: i32, %arg1: memref<8x8xf32, #tpu.memory_space<vmem>>, %arg2: memref<8x128xbf16, #tpu.memory_space<vmem>>, %arg3: memref<1x128xf32, #tpu.memory_space<vmem>>, %arg4: memref<128x128xbf16, #tpu.memory_space<vmem>>, %arg5: memref<1x128xf32, #tpu.memory_space<vmem>>, %arg6: memref<128x128xbf16, #tpu.memory_space<vmem>>, %arg7: memref<1x128xf32, #tpu.memory_space<vmem>>, %arg8: memref<8x4xf32, #tpu.memory_space<vmem>>) attributes {dimension_semantics = [#tpu.dimension_semantics<parallel>], iteration_bounds = array<i64: 1>, scalar_prefetch = 0 : i64, scratch_operands = 0 : i64, tpu.core_type = #tpu.core_type<tc>, window_params = [{transform_indices = @transform_0, window_bounds = array<i64: 8, 8>}, {pipeline_mode = #tpu.pipeline_mode<synchronous>, transform_indices = @transform_1, window_bounds = array<i64: 8, 128>}, {pipeline_mode = #tpu.pipeline_mode<synchronous>, transform_indices = @transform_2, window_bounds = array<i64: 1, 128>}, {pipeline_mode = #tpu.pipeline_mode<synchronous>, transform_indices = @transform_3, window_bounds = array<i64: 128, 128>}, {pipeline_mode = #tpu.pipeline_mode<synchronous>, transform_indices = @transform_4, window_bounds = array<i64: 1, 128>}, {pipeline_mode = #tpu.pipeline_mode<synchronous>, transform_indices = @transform_5, window_bounds = array<i64: 128, 128>}, {pipeline_mode = #tpu.pipeline_mode<synchronous>, transform_indices = @transform_6, window_bounds = array<i64: 1, 128>}, {transform_indices = @transform_7, window_bounds = array<i64: 8, 4>}]} {
    %c0 = arith.constant 0 : index
    %c0_0 = arith.constant 0 : index
    %0 = vector.load %arg1[%c0, %c0_0] : memref<8x8xf32, #tpu.memory_space<vmem>>, vector<8x8xf32>
    %1 = arith.truncf %0 : vector<8x8xf32> to vector<8x8xbf16>
    %c0_1 = arith.constant 0 : index
    %c0_2 = arith.constant 0 : index
    %2 = vector.load %arg2[%c0_1, %c0_2] : memref<8x128xbf16, #tpu.memory_space<vmem>>, vector<8x128xbf16>
    %cst = arith.constant dense<0.000000e+00> : vector<8x128xf32>
    %3 = tpu.matmul %1, %2, %cst {dimension_numbers = #tpu.dot_dimension_numbers<[1], [0], [0], [1], [0, 0, 1, 1], [], []>} : vector<8x8xbf16>, vector<8x128xbf16>, vector<8x128xf32> -> vector<8x128xf32>
    %c0_3 = arith.constant 0 : index
    %c0_4 = arith.constant 0 : index
    %4 = vector.load %arg3[%c0_3, %c0_4] : memref<1x128xf32, #tpu.memory_space<vmem>>, vector<1x128xf32>
    %5 = vector.broadcast %4 : vector<1x128xf32> to vector<8x128xf32>
    %6 = arith.addf %3, %5 : vector<8x128xf32>
    %cst_5 = arith.constant 0.000000e+00 : f32
    %7 = vector.broadcast %cst_5 : f32 to vector<8x128xf32>
    %8 = arith.maximumf %6, %7 : vector<8x128xf32>
    %9 = arith.truncf %8 : vector<8x128xf32> to vector<8x128xbf16>
    %c0_6 = arith.constant 0 : index
    %c0_7 = arith.constant 0 : index
    %10 = vector.load %arg4[%c0_6, %c0_7] : memref<128x128xbf16, #tpu.memory_space<vmem>>, vector<128x128xbf16>
    %cst_8 = arith.constant dense<0.000000e+00> : vector<8x128xf32>
    %11 = tpu.matmul %9, %10, %cst_8 {dimension_numbers = #tpu.dot_dimension_numbers<[1], [0], [0], [1], [0, 0, 1, 1], [], []>} : vector<8x128xbf16>, vector<128x128xbf16>, vector<8x128xf32> -> vector<8x128xf32>
    %c0_9 = arith.constant 0 : index
    %c0_10 = arith.constant 0 : index
    %12 = vector.load %arg5[%c0_9, %c0_10] : memref<1x128xf32, #tpu.memory_space<vmem>>, vector<1x128xf32>
    %13 = vector.broadcast %12 : vector<1x128xf32> to vector<8x128xf32>
    %14 = arith.addf %11, %13 : vector<8x128xf32>
    %cst_11 = arith.constant 0.000000e+00 : f32
    %15 = vector.broadcast %cst_11 : f32 to vector<8x128xf32>
    %16 = arith.maximumf %14, %15 : vector<8x128xf32>
    %17 = arith.truncf %16 : vector<8x128xf32> to vector<8x128xbf16>
    %c0_12 = arith.constant 0 : index
    %c0_13 = arith.constant 0 : index
    %18 = vector.load %arg6[%c0_12, %c0_13] : memref<128x128xbf16, #tpu.memory_space<vmem>>, vector<128x128xbf16>
    %cst_14 = arith.constant dense<0.000000e+00> : vector<8x128xf32>
    %19 = tpu.matmul %17, %18, %cst_14 {dimension_numbers = #tpu.dot_dimension_numbers<[1], [0], [0], [1], [0, 0, 1, 1], [], []>} : vector<8x128xbf16>, vector<128x128xbf16>, vector<8x128xf32> -> vector<8x128xf32>
    %c0_15 = arith.constant 0 : index
    %c0_16 = arith.constant 0 : index
    %20 = vector.load %arg7[%c0_15, %c0_16] : memref<1x128xf32, #tpu.memory_space<vmem>>, vector<1x128xf32>
    %21 = vector.broadcast %20 : vector<1x128xf32> to vector<8x128xf32>
    %22 = arith.addf %19, %21 : vector<8x128xf32>
    %23 = vector.extract_strided_slice %22 {offsets = [0, 0], sizes = [8, 4], strides = [1, 1]} : vector<8x128xf32> to vector<8x4xf32>
    %c0_17 = arith.constant 0 : index
    %c0_18 = arith.constant 0 : index
    %24 = vector.load %arg8[%c0_17, %c0_18] : memref<8x4xf32, #tpu.memory_space<vmem>>, vector<8x4xf32>
    tpu.vector_store %arg8[%c0_17, %c0_18], %23 {strides = array<i32>} : memref<8x4xf32, #tpu.memory_space<vmem>>, vector<8x4xf32>,
    return
  }
  func.func @transform_0(%arg0: i32) -> (i32, i32) {
    %c0_i32 = arith.constant 0 : i32
    %c0_i32_0 = arith.constant 0 : i32
    return %arg0, %c0_i32 : i32, i32
  }
  func.func @transform_1(%arg0: i32) -> (i32, i32) {
    %c0_i32 = arith.constant 0 : i32
    %c0_i32_0 = arith.constant 0 : i32
    %c0_i32_1 = arith.constant 0 : i32
    return %c0_i32, %c0_i32_0 : i32, i32
  }
  func.func @transform_2(%arg0: i32) -> (i32, i32) {
    %c0_i32 = arith.constant 0 : i32
    %c0_i32_0 = arith.constant 0 : i32
    %c0_i32_1 = arith.constant 0 : i32
    return %c0_i32, %c0_i32_0 : i32, i32
  }
  func.func @transform_3(%arg0: i32) -> (i32, i32) {
    %c0_i32 = arith.constant 0 : i32
    %c0_i32_0 = arith.constant 0 : i32
    %c0_i32_1 = arith.constant 0 : i32
    return %c0_i32, %c0_i32_0 : i32, i32
  }
  func.func @transform_4(%arg0: i32) -> (i32, i32) {
    %c0_i32 = arith.constant 0 : i32
    %c0_i32_0 = arith.constant 0 : i32
    %c0_i32_1 = arith.constant 0 : i32
    return %c0_i32, %c0_i32_0 : i32, i32
  }
  func.func @transform_5(%arg0: i32) -> (i32, i32) {
    %c0_i32 = arith.constant 0 : i32
    %c0_i32_0 = arith.constant 0 : i32
    %c0_i32_1 = arith.constant 0 : i32
    return %c0_i32, %c0_i32_0 : i32, i32
  }
  func.func @transform_6(%arg0: i32) -> (i32, i32) {
    %c0_i32 = arith.constant 0 : i32
    %c0_i32_0 = arith.constant 0 : i32
    %c0_i32_1 = arith.constant 0 : i32
    return %c0_i32, %c0_i32_0 : i32, i32
  }
  func.func @transform_7(%arg0: i32) -> (i32, i32) {
    %c0_i32 = arith.constant 0 : i32
    %c0_i32_0 = arith.constant 0 : i32
    return %arg0, %c0_i32 : i32, i32
  }
}

</mosaic_0001>

<llo_original>
// kernel: tpu_custom_call.1
$region0: #{tpu_custom_call.1}
  #allocation0 [shape = 'u32[]', space=smem, size = 0x4, offset = 0x4, fixed_abs, tag = 'smem constant byte address 0x4 - core index']
  #allocation1 [shape = 'u32[144,128]{1,0:T(1,128)}', space=vmem, size = 0x12000, scoped, tag = 'internal scratch']
  %s0 = inlined_call_operand.hbm [shape: f32[8,8], index: 0, kind: input, shape index: {}]
  %s1 = inlined_call_operand.hbm [shape: bf16[8,128], index: 1, kind: input, shape index: {}]
  %s2 = inlined_call_operand.vmem [shape: f32[1,128], index: 2, kind: input, shape index: {}]
  %s3 = inlined_call_operand.hbm [shape: bf16[128,128], index: 3, kind: input, shape index: {}]
  %s4 = inlined_call_operand.vmem [shape: f32[1,128], index: 4, kind: input, shape index: {}]
  %s5 = inlined_call_operand.hbm [shape: bf16[128,128], index: 5, kind: input, shape index: {}]
  %s6 = inlined_call_operand.vmem [shape: f32[1,128], index: 6, kind: input, shape index: {}]
  %s7 = inlined_call_operand.vmem [shape: f32[8,4], index: 7, kind: output, shape index: {}]
  %s8 = sld [smem:[#allocation0]]
  $region54: #{tpu_custom_call.1} parent=0
    _
  %s10 = ssub.s32 1, %s8
  %s11 = scalar_select 0, %s10, %s8
  $region1: #{tpu_custom_call.1} parent=0
    #allocation2 [shape = 'u8[4096]{0}', space=vmem, size = 0x1000, scoped, tag = 'input window, operand 0, single buffered']
    #allocation3 [shape = 's32[1]{0}', space=sflag, size = 0x4, scoped, tag = 'scoped memory for tpu_custom_call.1']
    #allocation4 [shape = 'u8[2048]{0}', space=vmem, size = 0x800, scoped, tag = 'input window, operand 1, single buffered']
    #allocation5 [shape = 's32[1]{0}', space=sflag, size = 0x4, scoped, tag = 'scoped memory for tpu_custom_call.1']
    #allocation6 [shape = 'u8[32768]{0}', space=vmem, size = 0x8000, scoped, tag = 'input window, operand 3, single buffered']
    #allocation7 [shape = 'u8[32768]{0}', space=vmem, size = 0x8000, scoped, tag = 'input window, operand 5, single buffered']
    #allocation8 [shape = 's32[1]{0}', space=sflag, size = 0x4, scoped, tag = 'scoped memory for tpu_custom_call.1']
    %12 = vsyncpa [#allocation3], 0
    %13 = vsyncpa [#allocation5], 0
    %14 = vsyncpa [#allocation8], 0
    // Predicated region
    $region2: #{tpu_custom_call.1} parent=1 // pred_check
      _
    $region3: #{tpu_custom_call.1} parent=1 // pred_check_branch
      %16 = sbr.rel (0) target = $region5
    $region4: #{tpu_custom_call.1} parent=1 // pred_region
      %s18 = ssub.s32 128, 128
      %19 = vsyncadd [#allocation3], %s18
      %s21 = sshll.u32 [#allocation2], 4
      %s22 = int_to_ptr.vmem [resolvable:$true] %s21
      %24 = dma.hbm_to_vmem [thread:$0]  %s0, 128, %s22, [#allocation3]
    $region5: #{tpu_custom_call.1} parent=1 // pred_fallthru
      _
    // Predicated region
    $region6: #{tpu_custom_call.1} parent=1 // pred_check
      _
    $region7: #{tpu_custom_call.1} parent=1 // pred_check_branch
      %26 = sbr.rel (0) target = $region9
    $region8: #{tpu_custom_call.1} parent=1 // pred_region
      %s28 = ssub.s32 64, 64
      %29 = vsyncadd [#allocation5], %s28
      %s31 = sshll.u32 [#allocation4], 4
      %s32 = int_to_ptr.vmem [resolvable:$true] %s31
      %34 = dma.hbm_to_vmem [thread:$0]  %s1, 64, %s32, [#allocation5]
    $region9: #{tpu_custom_call.1} parent=1 // pred_fallthru
      _
    // Predicated region
    $region10: #{tpu_custom_call.1} parent=1 // pred_check
      _
    $region11: #{tpu_custom_call.1} parent=1 // pred_check_branch
      %36 = sbr.rel (0) target = $region13
    $region12: #{tpu_custom_call.1} parent=1 // pred_region
      _
    $region13: #{tpu_custom_call.1} parent=1 // pred_fallthru
      _
    // Predicated region
    $region14: #{tpu_custom_call.1} parent=1 // pred_check
      _
    $region15: #{tpu_custom_call.1} parent=1 // pred_check_branch
      %38 = sbr.rel (0) target = $region17
    $region16: #{tpu_custom_call.1} parent=1 // pred_region
      %s40 = ssub.s32 1024, 1024
      %41 = vsyncadd [#allocation5], %s40
      %s42 = sshll.u32 [#allocation6], 4
      %s43 = int_to_ptr.vmem [resolvable:$true] %s42
      %48 = dma.hbm_to_vmem [thread:$0]  %s3, 1024, %s43, [#allocation5], 64, 64, 4
    $region17: #{tpu_custom_call.1} parent=1 // pred_fallthru
      _
    // Predicated region
    $region18: #{tpu_custom_call.1} parent=1 // pred_check
      _
    $region19: #{tpu_custom_call.1} parent=1 // pred_check_branch
      %50 = sbr.rel (0) target = $region21
    $region20: #{tpu_custom_call.1} parent=1 // pred_region
      _
    $region21: #{tpu_custom_call.1} parent=1 // pred_fallthru
      _
    // Predicated region
    $region22: #{tpu_custom_call.1} parent=1 // pred_check
      _
    $region23: #{tpu_custom_call.1} parent=1 // pred_check_branch
      %52 = sbr.rel (0) target = $region25
    $region24: #{tpu_custom_call.1} parent=1 // pred_region
      %s54 = ssub.s32 1024, 1024
      %55 = vsyncadd [#allocation8], %s54
      %s56 = sshll.u32 [#allocation7], 4
      %s57 = int_to_ptr.vmem [resolvable:$true] %s56
      %62 = dma.hbm_to_vmem [thread:$0]  %s5, 1024, %s57, [#allocation8], 64, 64, 4
    $region25: #{tpu_custom_call.1} parent=1 // pred_fallthru
      _
    // Predicated region
    $region26: #{tpu_custom_call.1} parent=1 // pred_check
      _
    $region27: #{tpu_custom_call.1} parent=1 // pred_check_branch
      %64 = sbr.rel (0) target = $region29
    $region28: #{tpu_custom_call.1} parent=1 // pred_region
      _
    $region29: #{tpu_custom_call.1} parent=1 // pred_fallthru
      _
    // Predicated region
    $region30: #{tpu_custom_call.1} parent=1 // pred_check
      _
    $region31: #{tpu_custom_call.1} parent=1 // pred_check_branch
      %66 = sbr.rel (0) target = $region33
    $region32: #{tpu_custom_call.1} parent=1 // pred_region
      %67 = dma.done [#allocation3], 128
    $region33: #{tpu_custom_call.1} parent=1 // pred_fallthru
      _
    // Predicated region
    $region34: #{tpu_custom_call.1} parent=1 // pred_check
      _
    $region35: #{tpu_custom_call.1} parent=1 // pred_check_branch
      %69 = sbr.rel (0) target = $region37
    $region36: #{tpu_custom_call.1} parent=1 // pred_region
      %70 = dma.done [#allocation5], 64
    $region37: #{tpu_custom_call.1} parent=1 // pred_fallthru
      _
    // Predicated region
    $region38: #{tpu_custom_call.1} parent=1 // pred_check
      _
    $region39: #{tpu_custom_call.1} parent=1 // pred_check_branch
      %72 = sbr.rel (0) target = $region41
    $region40: #{tpu_custom_call.1} parent=1 // pred_region
      %73 = dma.done [#allocation5], 1024
    $region41: #{tpu_custom_call.1} parent=1 // pred_fallthru
      _
    // Predicated region
    $region42: #{tpu_custom_call.1} parent=1 // pred_check
      _
    $region43: #{tpu_custom_call.1} parent=1 // pred_check_branch
      %75 = sbr.rel (0) target = $region45
    $region44: #{tpu_custom_call.1} parent=1 // pred_region
      %76 = dma.done [#allocation8], 1024
    $region45: #{tpu_custom_call.1} parent=1 // pred_fallthru
      _
    %v78 = vld [vmem:[#allocation2] sm:$0xff]
    %v79 = vpack.c.bf16 %v78, %v78
    %v80 = vld [vmem:[#allocation4] sm:$0xf]
    %v81 = vld [vmem:[%s2] sm:$0x1]
    %v83 = vlaneseq
    %v84 = vshrl.u32 %v83, 7
    %v85 = vsub.s32 0, %v84
    %v86 = vrot.slane %v81, %v85
    %vm88 = vcmask 64512
    %v90 = vsel %vm88, %v79, 0
    %vm92 = vcmask 1043456
    %v94 = vsel %vm92, %v80, 0
    %96 = vmatprep.subr.bf16.mxu0 0
    %97 = vmatpush1.bf16.msra.mxu0 %v94
    %98 = vmatprep.subr.bf16.mxu0 0
    %99 = vmatpush1.bf16.msra.mxu0 0
    %100 = vmatprep.subr.bf16.mxu0 0
    %101 = vmatpush1.bf16.msra.mxu0 0
    %102 = vmatprep.subr.bf16.mxu0 0
    %103 = vmatpush1.bf16.msra.mxu0 0
    %104 = vmatprep.subr.bf16.mxu0 0
    %105 = vmatpush1.bf16.msra.mxu0 0
    %106 = vmatprep.subr.bf16.mxu0 0
    %107 = vmatpush1.bf16.msra.mxu0 0
    %108 = vmatprep.subr.bf16.mxu0 0
    %109 = vmatpush1.bf16.msra.mxu0 0
    %110 = vmatprep.subr.bf16.mxu0 0
    %111 = vmatpush1.bf16.msra.mxu0 0
    %112 = vmatprep.subr.bf16.mxu0 0
    %113 = vmatpush1.bf16.msra.mxu0 0
    %114 = vmatprep.subr.bf16.mxu0 0
    %115 = vmatpush1.bf16.msra.mxu0 0
    %116 = vmatprep.subr.bf16.mxu0 0
    %117 = vmatpush1.bf16.msra.mxu0 0
    %118 = vmatprep.subr.bf16.mxu0 0
    %119 = vmatpush1.bf16.msra.mxu0 0
    %120 = vmatprep.subr.bf16.mxu0 0
    %121 = vmatpush1.bf16.msra.mxu0 0
    %122 = vmatprep.subr.bf16.mxu0 0
    %123 = vmatpush1.bf16.msra.mxu0 0
    %124 = vmatprep.subr.bf16.mxu0 0
    %125 = vmatpush1.bf16.msra.mxu0 0
    %126 = vmatprep.subr.bf16.mxu0 0
    %127 = vmatpush1.bf16.msra.mxu0 0
    %128 = vmatprep.mubr.bf16.mxu0 0
    %129 = vmatmul.mubr.bf16.gmra.mrb[0].mxu0 %v90
    %v130 = vpop.f32.mrb[0].mxu0
    %v131 = vadd.f32 %v86, %v130
    %v132 = vpop.f32.mrb[0].mxu0
    %v133 = vpop.f32.mrb[0].mxu0
    %v134 = vpop.f32.mrb[0].mxu0
    %135 = vdwg.mxu0
    %v136 = vmax.f32 %v131, 0.0
    %v137 = vpack.c.bf16 %v136, %v136
    %v138 = vld [vmem:[#allocation6] sm:$0xf]
    %v139 = vld [vmem:[#allocation6 + $0x4] sm:$0xf]
    %v140 = vld [vmem:[#allocation6 + $0x8] sm:$0xf]
    %v141 = vld [vmem:[#allocation6 + $0xc] sm:$0xf]
    %v142 = vld [vmem:[#allocation6 + $0x10] sm:$0xf]
    %v143 = vld [vmem:[#allocation6 + $0x14] sm:$0xf]
    %v144 = vld [vmem:[#allocation6 + $0x18] sm:$0xf]
    %v145 = vld [vmem:[#allocation6 + $0x1c] sm:$0xf]
    %v146 = vld [vmem:[#allocation6 + $0x20] sm:$0xf]
    %v147 = vld [vmem:[#allocation6 + $0x24] sm:$0xf]
    %v148 = vld [vmem:[#allocation6 + $0x28] sm:$0xf]
    %v149 = vld [vmem:[#allocation6 + $0x2c] sm:$0xf]
    %v150 = vld [vmem:[#allocation6 + $0x30] sm:$0xf]
    %v151 = vld [vmem:[#allocation6 + $0x34] sm:$0xf]
    %v152 = vld [vmem:[#allocation6 + $0x38] sm:$0xf]
    %v153 = vld [vmem:[#allocation6 + $0x3c] sm:$0xf]
    %v154 = vld [vmem:[%s4] sm:$0x1]
    %v156 = vlaneseq
    %v157 = vshrl.u32 %v156, 7
    %v158 = vsub.s32 0, %v157
    %v159 = vrot.slane %v154, %v158
    %v177 = vunpack.c.l.b16 %v138
    %v178 = vunpack.c.l.b16 %v139
    %v179 = vunpack.c.l.b16 %v140
    %v180 = vunpack.c.l.b16 %v141
    %v181 = vunpack.c.l.b16 %v142
    %v182 = vunpack.c.l.b16 %v143
    %v183 = vunpack.c.l.b16 %v144
    %v184 = vunpack.c.l.b16 %v145
    %v185 = vunpack.c.l.b16 %v146
    %v186 = vunpack.c.l.b16 %v147
    %v187 = vunpack.c.l.b16 %v148
    %v188 = vunpack.c.l.b16 %v149
    %v189 = vunpack.c.l.b16 %v150
    %v190 = vunpack.c.l.b16 %v151
    %v191 = vunpack.c.l.b16 %v152
    %v192 = vunpack.c.l.b16 %v153
    %v193 = vpack.c.b16 %v178, %v177
    %v194 = vpack.c.b16 %v180, %v179
    %v195 = vpack.c.b16 %v182, %v181
    %v196 = vpack.c.b16 %v184, %v183
    %v197 = vpack.c.b16 %v186, %v185
    %v198 = vpack.c.b16 %v188, %v187
    %v199 = vpack.c.b16 %v190, %v189
    %v200 = vpack.c.b16 %v192, %v191
    %209 = vmatprep.subr.bf16.mxu0 0
    %210 = vmatpush1.bf16.msra.mxu0 %v193
    %211 = vmatprep.subr.bf16.mxu0 0
    %212 = vmatpush1.bf16.msra.mxu0 %v194
    %213 = vmatprep.subr.bf16.mxu0 0
    %214 = vmatpush1.bf16.msra.mxu0 %v195
    %215 = vmatprep.subr.bf16.mxu0 0
    %216 = vmatpush1.bf16.msra.mxu0 %v196
    %217 = vmatprep.subr.bf16.mxu0 0
    %218 = vmatpush1.bf16.msra.mxu0 %v197
    %219 = vmatprep.subr.bf16.mxu0 0
    %220 = vmatpush1.bf16.msra.mxu0 %v198
    %221 = vmatprep.subr.bf16.mxu0 0
    %222 = vmatpush1.bf16.msra.mxu0 %v199
    %223 = vmatprep.subr.bf16.mxu0 0
    %224 = vmatpush1.bf16.msra.mxu0 %v200
    %225 = vmatprep.subr.bf16.mxu0 0
    %226 = vmatpush1.bf16.msra.mxu0 0
    %227 = vmatprep.subr.bf16.mxu0 0
    %228 = vmatpush1.bf16.msra.mxu0 0
    %229 = vmatprep.subr.bf16.mxu0 0
    %230 = vmatpush1.bf16.msra.mxu0 0
    %231 = vmatprep.subr.bf16.mxu0 0
    %232 = vmatpush1.bf16.msra.mxu0 0
    %233 = vmatprep.subr.bf16.mxu0 0
    %234 = vmatpush1.bf16.msra.mxu0 0
    %235 = vmatprep.subr.bf16.mxu0 0
    %236 = vmatpush1.bf16.msra.mxu0 0
    %237 = vmatprep.subr.bf16.mxu0 0
    %238 = vmatpush1.bf16.msra.mxu0 0
    %239 = vmatprep.subr.bf16.mxu0 0
    %240 = vmatpush1.bf16.msra.mxu0 0
    %241 = vmatprep.mubr.bf16.mxu0 0
    %242 = vmatmul.mubr.bf16.gmra.mrb[0].mxu0 %v137
    %v243 = vpop.f32.mrb[0].mxu0
    %v244 = vadd.f32 %v159, %v243
    %v245 = vpop.f32.mrb[0].mxu0
    %v246 = vpop.f32.mrb[0].mxu0
    %v247 = vpop.f32.mrb[0].mxu0
    %248 = vdwg.mxu0
    %v249 = vmax.f32 %v244, 0.0
    %v250 = vpack.c.bf16 %v249, %v249
    %v251 = vld [vmem:[#allocation7] sm:$0xf]
    %v252 = vld [vmem:[#allocation7 + $0x4] sm:$0xf]
    %v253 = vld [vmem:[#allocation7 + $0x8] sm:$0xf]
    %v254 = vld [vmem:[#allocation7 + $0xc] sm:$0xf]
    %v255 = vld [vmem:[#allocation7 + $0x10] sm:$0xf]
    %v256 = vld [vmem:[#allocation7 + $0x14] sm:$0xf]
    %v257 = vld [vmem:[#allocation7 + $0x18] sm:$0xf]
    %v258 = vld [vmem:[#allocation7 + $0x1c] sm:$0xf]
    %v259 = vld [vmem:[#allocation7 + $0x20] sm:$0xf]
    %v260 = vld [vmem:[#allocation7 + $0x24] sm:$0xf]
    %v261 = vld [vmem:[#allocation7 + $0x28] sm:$0xf]
    %v262 = vld [vmem:[#allocation7 + $0x2c] sm:$0xf]
    %v263 = vld [vmem:[#allocation7 + $0x30] sm:$0xf]
    %v264 = vld [vmem:[#allocation7 + $0x34] sm:$0xf]
    %v265 = vld [vmem:[#allocation7 + $0x38] sm:$0xf]
    %v266 = vld [vmem:[#allocation7 + $0x3c] sm:$0xf]
    %v267 = vld [vmem:[%s6] sm:$0x1]
    %v269 = vlaneseq
    %v270 = vshrl.u32 %v269, 7
    %v271 = vsub.s32 0, %v270
    %v272 = vrot.slane %v267, %v271
    %v290 = vunpack.c.l.b16 %v251
    %v291 = vunpack.c.l.b16 %v252
    %v292 = vunpack.c.l.b16 %v253
    %v293 = vunpack.c.l.b16 %v254
    %v294 = vunpack.c.l.b16 %v255
    %v295 = vunpack.c.l.b16 %v256
    %v296 = vunpack.c.l.b16 %v257
    %v297 = vunpack.c.l.b16 %v258
    %v298 = vunpack.c.l.b16 %v259
    %v299 = vunpack.c.l.b16 %v260
    %v300 = vunpack.c.l.b16 %v261
    %v301 = vunpack.c.l.b16 %v262
    %v302 = vunpack.c.l.b16 %v263
    %v303 = vunpack.c.l.b16 %v264
    %v304 = vunpack.c.l.b16 %v265
    %v305 = vunpack.c.l.b16 %v266
    %v306 = vpack.c.b16 %v291, %v290
    %v307 = vpack.c.b16 %v293, %v292
    %v308 = vpack.c.b16 %v295, %v294
    %v309 = vpack.c.b16 %v297, %v296
    %v310 = vpack.c.b16 %v299, %v298
    %v311 = vpack.c.b16 %v301, %v300
    %v312 = vpack.c.b16 %v303, %v302
    %v313 = vpack.c.b16 %v305, %v304
    %322 = vmatprep.subr.bf16.mxu0 0
    %323 = vmatpush1.bf16.msra.mxu0 %v306
    %324 = vmatprep.subr.bf16.mxu0 0
    %325 = vmatpush1.bf16.msra.mxu0 %v307
    %326 = vmatprep.subr.bf16.mxu0 0
    %327 = vmatpush1.bf16.msra.mxu0 %v308
    %328 = vmatprep.subr.bf16.mxu0 0
    %329 = vmatpush1.bf16.msra.mxu0 %v309
    %330 = vmatprep.subr.bf16.mxu0 0
    %331 = vmatpush1.bf16.msra.mxu0 %v310
    %332 = vmatprep.subr.bf16.mxu0 0
    %333 = vmatpush1.bf16.msra.mxu0 %v311
    %334 = vmatprep.subr.bf16.mxu0 0
    %335 = vmatpush1.bf16.msra.mxu0 %v312
    %336 = vmatprep.subr.bf16.mxu0 0
    %337 = vmatpush1.bf16.msra.mxu0 %v313
    %338 = vmatprep.subr.bf16.mxu0 0
    %339 = vmatpush1.bf16.msra.mxu0 0
    %340 = vmatprep.subr.bf16.mxu0 0
    %341 = vmatpush1.bf16.msra.mxu0 0
    %342 = vmatprep.subr.bf16.mxu0 0
    %343 = vmatpush1.bf16.msra.mxu0 0
    %344 = vmatprep.subr.bf16.mxu0 0
    %345 = vmatpush1.bf16.msra.mxu0 0
    %346 = vmatprep.subr.bf16.mxu0 0
    %347 = vmatpush1.bf16.msra.mxu0 0
    %348 = vmatprep.subr.bf16.mxu0 0
    %349 = vmatpush1.bf16.msra.mxu0 0
    %350 = vmatprep.subr.bf16.mxu0 0
    %351 = vmatpush1.bf16.msra.mxu0 0
    %352 = vmatprep.subr.bf16.mxu0 0
    %353 = vmatpush1.bf16.msra.mxu0 0
    %354 = vmatprep.mubr.bf16.mxu0 0
    %355 = vmatmul.mubr.bf16.gmra.mrb[0].mxu0 %v250
    %v356 = vpop.f32.mrb[0].mxu0
    %v357 = vadd.f32 %v272, %v356
    %v358 = vpop.f32.mrb[0].mxu0
    %v359 = vpop.f32.mrb[0].mxu0
    %v360 = vpop.f32.mrb[0].mxu0
    %361 = vdwg.mxu0
    %vm362 = vcmask 31744
    %363 = vst.msk [vmem:[%s7] sm:$0xff] %vm362, %v357
    // Predicated region
    $region46: #{tpu_custom_call.1} parent=1 // pred_check
      _
    $region47: #{tpu_custom_call.1} parent=1 // pred_check_branch
      %365 = sbr.rel (0) target = $region49
    $region48: #{tpu_custom_call.1} parent=1 // pred_region
      _
    $region49: #{tpu_custom_call.1} parent=1 // pred_fallthru
      _
    // Predicated region
    $region50: #{tpu_custom_call.1} parent=1 // pred_check
      _
    $region51: #{tpu_custom_call.1} parent=1 // pred_check_branch
      %367 = sbr.rel (0) target = $region53
    $region52: #{tpu_custom_call.1} parent=1 // pred_region
      _
    $region53: #{tpu_custom_call.1} parent=1 // pred_fallthru
      _
    %368 = vsyncpa [#allocation3], 1
    %369 = vsyncpa [#allocation5], 1
    %370 = vsyncpa [#allocation8], 1

</llo_original>
